<compile_context>
chip_gen: v7x
topology: tpu7x:2x2x1
jax: 0.10.0
libtpu: 0.0.40
codegen_flags: <defaults>
</compile_context>

<pallas_src>
import numpy as np
import jax
import jax.numpy as jnp
from jax import lax
from jax.experimental import pallas as pl
from jax.experimental.pallas import tpu as pltpu  # noqa: F401  (kept for TPU backend)

# ---- small deterministic config (non-hybrid: config.patches['size'] = P) ----
B = 2                  # batch
C = 4                  # in_channels
IMG = 16               # img_size (square)
P = 4                  # patch_size
G = IMG // P           # patches per image side
N_PATCHES = G * G      # 16
HIDDEN = 32            # config.hidden_size
S = N_PATCHES + 1      # sequence length incl. cls token
K = C * P * P          # flattened patch length = 64


def embeddings_kernel(patches_ref, params_ref, out_ref):
    """patches_ref: (B*S, K)        f32  -- row b*S+0 is all-zero (cls slot),
                                            rows b*S+1.. are the image patches
       params_ref:  (K + B*S, H)    f32  -- rows [0:K)   = conv weight (in, out)
                                            rows [K:)    = additive slab
       out_ref:     (B*S, H)        f32
    """
    w = params_ref[:K, :]       # (K, HIDDEN)    -- K=64, sublane-aligned slice
    add = params_ref[K:, :]     # (B*S, HIDDEN)  -- starts at row 64, aligned

    # One MXU matmul (batch folded into M; zero cls rows are free padding),
    # one VPU add, one unmasked full-block store.
    out_ref[...] = jnp.dot(patches_ref[...], w,
                           preferred_element_type=jnp.float32) + add
    # Dropout(config.transformer['dropout_rate']) is identity at inference.


def init_params(w_conv, b_conv, cls_token, pos_emb):
    """One-time parameter packing (module init), hoisted out of the forward.
       w_conv: (HIDDEN, C, P, P) torch OIHW.  b_conv: (HIDDEN,).
       cls_token: (1, 1, HIDDEN).  pos_emb: (1, S, HIDDEN).
       Returns packed params (K + B*S, HIDDEN) f32."""
    w_flat = w_conv.reshape(HIDDEN, K).T                                # (K, H)
    add_seq = jnp.concatenate(
        [cls_token.reshape(1, HIDDEN) + pos_emb[0, 0:1, :],             # cls + pos[0]  (no conv bias!)
         b_conv.reshape(1, HIDDEN) + pos_emb[0, 1:, :]], axis=0)        # bias + pos[1:]
    add = jnp.tile(add_seq, (B, 1))                                     # (B*S, H)
    return jnp.concatenate([w_flat, add], axis=0).astype(jnp.float32)   # (K+B*S, H)


@jax.jit
def skin_motion_embeddings(x, params):
    """x: (B, C, IMG, IMG) f32.  params: packed (K + B*S, HIDDEN) from init_params.
       Returns (embeddings (B, S, HIDDEN), features=None)."""
    # Per-call layout plumbing only: non-overlapping PxP patches, (c, ph, pw)
    # ordering to match the flattened conv weight, plus one zero row per batch
    # in the cls slot so the cls row rides through the same matmul.
    patches = x.reshape(B, C, G, P, G, P).transpose(0, 2, 4, 1, 3, 5)
    patches = patches.reshape(B, N_PATCHES, K)
    patches = jnp.concatenate(
        [jnp.zeros((B, 1, K), patches.dtype), patches], axis=1)         # (B, S, K)
    patches = patches.reshape(B * S, K)

    emb2d = pl.pallas_call(
        embeddings_kernel,
        out_shape=jax.ShapeDtypeStruct((B * S, HIDDEN), jnp.float32),
        # no grid / no BlockSpecs: single program, whole (tiny) arrays in VMEM
    )(patches, params)

    return emb2d.reshape(B, S, HIDDEN), None   # features is None (non-hybrid)


def reference(x, w_conv, b_conv, cls_token, pos_emb):
    """Pure-JAX reference mirroring the PyTorch forward (eval mode)."""
    y = lax.conv_general_dilated(
        x, w_conv, window_strides=(P, P), padding="VALID",
        dimension_numbers=("NCHW", "OIHW", "NCHW"),
        precision=lax.Precision.HIGHEST)
    y = y + b_conv.reshape(1, HIDDEN, 1, 1)                       # (B, HIDDEN, G, G)
    y = y.reshape(B, HIDDEN, N_PATCHES).transpose(0, 2, 1)        # flatten(2).transpose(-1,-2)
    cls_b = jnp.broadcast_to(cls_token, (B, 1, HIDDEN))
    emb = jnp.concatenate([cls_b, y], axis=1) + pos_emb
    return emb


if __name__ == "__main__":
    key = jax.random.PRNGKey(0)
    kx, kw, kb, kc, kp = jax.random.split(key, 5)
    x = jax.random.normal(kx, (B, C, IMG, IMG), jnp.float32)
    w_conv = jax.random.normal(kw, (HIDDEN, C, P, P), jnp.float32) * 0.05
    b_conv = jax.random.normal(kb, (HIDDEN,), jnp.float32) * 0.01
    cls_token = jax.random.normal(kc, (1, 1, HIDDEN), jnp.float32)     # torch.randn
    # nn.Parameter(torch.zeros(...)) in the module; random here so the add is exercised.
    pos_emb = jax.random.normal(kp, (1, S, HIDDEN), jnp.float32) * 0.02

    # One-time parameter packing (module init), not part of the per-call forward.
    params = jax.block_until_ready(init_params(w_conv, b_conv, cls_token, pos_emb))

    emb, features = skin_motion_embeddings(x, params)
    emb = jax.block_until_ready(emb)
    assert features is None

    ref = reference(x, w_conv, b_conv, cls_token, pos_emb)
    np.testing.assert_allclose(np.asarray(emb), np.asarray(ref), rtol=1e-3, atol=1e-3)
    print("KERNEL_OK")
</pallas_src>

<mosaic_0001>
module attributes {stable_mosaic.version = 11 : i64} {
  func.func @embeddings_kernel(%arg0: memref<34x64xf32, #tpu.memory_space<vmem>>, %arg1: memref<98x32xf32, #tpu.memory_space<vmem>>, %arg2: memref<34x32xf32, #tpu.memory_space<vmem>>) attributes {dimension_semantics = [], scalar_prefetch = 0 : i64, scratch_operands = 0 : i64, tpu.core_type = #tpu.core_type<tc>} {
    %c0 = arith.constant 0 : index
    %c0_0 = arith.constant 0 : index
    %0 = vector.load %arg1[%c0, %c0_0] : memref<98x32xf32, #tpu.memory_space<vmem>>, vector<64x32xf32>
    %c64 = arith.constant 64 : index
    %c0_1 = arith.constant 0 : index
    %1 = vector.load %arg1[%c64, %c0_1] : memref<98x32xf32, #tpu.memory_space<vmem>>, vector<34x32xf32>
    %c0_2 = arith.constant 0 : index
    %c0_3 = arith.constant 0 : index
    %2 = vector.load %arg0[%c0_2, %c0_3] : memref<34x64xf32, #tpu.memory_space<vmem>>, vector<34x64xf32>
    %cst = arith.constant dense<0.000000e+00> : vector<34x32xf32>
    %3 = tpu.matmul %2, %0, %cst {dimension_numbers = #tpu.dot_dimension_numbers<[1], [0], [0], [1], [0, 0, 1, 1], [], []>} : vector<34x64xf32>, vector<64x32xf32>, vector<34x32xf32> -> vector<34x32xf32>
    %4 = arith.addf %3, %1 : vector<34x32xf32>
    %c0_4 = arith.constant 0 : index
    %c0_5 = arith.constant 0 : index
    %5 = vector.load %arg2[%c0_4, %c0_5] : memref<34x32xf32, #tpu.memory_space<vmem>>, vector<34x32xf32>
    tpu.vector_store %arg2[%c0_4, %c0_5], %4 {strides = array<i32>} : memref<34x32xf32, #tpu.memory_space<vmem>>, vector<34x32xf32>,
    return
  }
}

</mosaic_0001>

<llo_original>
// kernel: skin_motion_embeddings.1
$region0: #{skin_motion_embeddings.1}
  #allocation0 [shape = 'u32[]', space=smem, size = 0x4, offset = 0x4, fixed_abs, tag = 'smem constant byte address 0x4 - core index']
  #allocation1 [shape = 'u32[144,128]{1,0:T(1,128)}', space=vmem, size = 0x12000, scoped, tag = 'internal scratch']
  %s0 = inlined_call_operand.vmem [shape: f32[34,64], index: 0, kind: input, shape index: {}]
  %s1 = inlined_call_operand.vmem [shape: f32[98,32], index: 1, kind: input, shape index: {}]
  %s2 = inlined_call_operand.vmem [shape: f32[34,32], index: 2, kind: output, shape index: {}]
  %s3 = sld [smem:[#allocation0]]
  $region18: #{skin_motion_embeddings.1} parent=0
    _
  %s5 = ssub.s32 1, %s3
  %s6 = scalar_select 0, %s5, %s3
  // Predicated region
  $region2: #{skin_motion_embeddings.1} parent=0 // pred_check
    _
  $region3: #{skin_motion_embeddings.1} parent=0 // pred_check_branch
    %8 = sbr.rel (0) target = $region5
  $region4: #{skin_motion_embeddings.1} parent=0 // pred_region
    _
  $region5: #{skin_motion_embeddings.1} parent=0 // pred_fallthru
    _
  // Predicated region
  $region6: #{skin_motion_embeddings.1} parent=0 // pred_check
    _
  $region7: #{skin_motion_embeddings.1} parent=0 // pred_check_branch
    %10 = sbr.rel (0) target = $region9
  $region8: #{skin_motion_embeddings.1} parent=0 // pred_region
    _
  $region9: #{skin_motion_embeddings.1} parent=0 // pred_fallthru
    _
  %v11 = vld [vmem:[%s1] sm:$0xff]
  %v12 = vld [vmem:[%s1 + $0x8] sm:$0xff]
  %v13 = vld [vmem:[%s1 + $0x10] sm:$0xff]
  %v14 = vld [vmem:[%s1 + $0x18] sm:$0xff]
  %v15 = vld [vmem:[%s1 + $0x20] sm:$0xff]
  %v16 = vld [vmem:[%s1 + $0x28] sm:$0xff]
  %v17 = vld [vmem:[%s1 + $0x30] sm:$0xff]
  %v18 = vld [vmem:[%s1 + $0x38] sm:$0xff]
  %v19 = vld [vmem:[%s1 + $0x40] sm:$0xff]
  %v20 = vld [vmem:[%s1 + $0x48] sm:$0xff]
  %v21 = vld [vmem:[%s1 + $0x50] sm:$0xff]
  %v22 = vld [vmem:[%s1 + $0x58] sm:$0xff]
  %v23 = vld [vmem:[%s1 + $0x60] sm:$0x3]
  %v24 = vld [vmem:[%s0] sm:$0xff]
  %v25 = vld [vmem:[%s0 + $0x8] sm:$0xff]
  %v26 = vld [vmem:[%s0 + $0x10] sm:$0xff]
  %v27 = vld [vmem:[%s0 + $0x18] sm:$0xff]
  %v28 = vld [vmem:[%s0 + $0x20] sm:$0x3]
  %vm29 = vcmask 523264
  %v31 = vsel %vm29, %v24, 0
  %v34 = vsel %vm29, %v25, 0
  %v37 = vsel %vm29, %v26, 0
  %v40 = vsel %vm29, %v27, 0
  %v43 = vsel %vm29, %v28, 0
  %45 = vmatprep.subr.mxu0 0.0
  %46 = vmatpush1.msra.mxu0 %v11
  %47 = vmatprep.subr.mxu0 0.0
  %48 = vmatpush1.msra.mxu0 %v12
  %49 = vmatprep.subr.mxu0 0.0
  %50 = vmatpush1.msra.mxu0 %v13
  %51 = vmatprep.subr.mxu0 0.0
  %52 = vmatpush1.msra.mxu0 %v14
  %53 = vmatprep.subr.mxu0 0.0
  %54 = vmatpush1.msra.mxu0 %v15
  %55 = vmatprep.subr.mxu0 0.0
  %56 = vmatpush1.msra.mxu0 %v16
  %57 = vmatprep.subr.mxu0 0.0
  %58 = vmatpush1.msra.mxu0 %v17
  %59 = vmatprep.subr.mxu0 0.0
  %60 = vmatpush1.msra.mxu0 %v18
  %61 = vmatprep.subr.mxu0 0.0
  %62 = vmatpush1.msra.mxu0 0.0
  %63 = vmatprep.subr.mxu0 0.0
  %64 = vmatpush1.msra.mxu0 0.0
  %65 = vmatprep.subr.mxu0 0.0
  %66 = vmatpush1.msra.mxu0 0.0
  %67 = vmatprep.subr.mxu0 0.0
  %68 = vmatpush1.msra.mxu0 0.0
  %69 = vmatprep.subr.mxu0 0.0
  %70 = vmatpush1.msra.mxu0 0.0
  %71 = vmatprep.subr.mxu0 0.0
  %72 = vmatpush1.msra.mxu0 0.0
  %73 = vmatprep.subr.mxu0 0.0
  %74 = vmatpush1.msra.mxu0 0.0
  %75 = vmatprep.subr.mxu0 0.0
  %76 = vmatpush1.msra.mxu0 0.0
  %77 = vmatprep.subr.mxu0 0.0
  %78 = vmatpush1.msra.mxu0 0.0
  %79 = vmatprep.subr.mxu0 0.0
  %80 = vmatpush1.msra.mxu0 0.0
  %81 = vmatprep.subr.mxu0 0.0
  %82 = vmatpush1.msra.mxu0 0.0
  %83 = vmatprep.subr.mxu0 0.0
  %84 = vmatpush1.msra.mxu0 0.0
  %85 = vmatprep.subr.mxu0 0.0
  %86 = vmatpush1.msra.mxu0 0.0
  %87 = vmatprep.subr.mxu0 0.0
  %88 = vmatpush1.msra.mxu0 0.0
  %89 = vmatprep.subr.mxu0 0.0
  %90 = vmatpush1.msra.mxu0 0.0
  %91 = vmatprep.subr.mxu0 0.0
  %92 = vmatpush1.msra.mxu0 0.0
  %93 = vmatprep.subr.mxu0 0.0
  %94 = vmatpush1.msra.mxu0 0.0
  %95 = vmatprep.subr.mxu0 0.0
  %96 = vmatpush1.msra.mxu0 0.0
  %97 = vmatprep.subr.mxu0 0.0
  %98 = vmatpush1.msra.mxu0 0.0
  %99 = vmatprep.subr.mxu0 0.0
  %100 = vmatpush1.msra.mxu0 0.0
  %101 = vmatprep.subr.mxu0 0.0
  %102 = vmatpush1.msra.mxu0 0.0
  %103 = vmatprep.subr.mxu0 0.0
  %104 = vmatpush1.msra.mxu0 0.0
  %105 = vmatprep.subr.mxu0 0.0
  %106 = vmatpush1.msra.mxu0 0.0
  %107 = vmatprep.subr.mxu0 0.0
  %108 = vmatpush1.msra.mxu0 0.0
  %109 = vmatprep.mubr.f32.mxu0 0.0
  %110 = vmatmul.mubr.f32.gmra.mrb[0].mxu0 %v31
  %v111 = vpop.f32.mrb[0].mxu0
  %v112 = vadd.f32 %v19, %v111
  %v113 = vpop.f32.mrb[0].mxu0
  %114 = vmatprep.mubr.f32.mxu0 0.0
  %115 = vmatmul.mubr.f32.gmra.mrb[0].mxu0 %v34
  %v116 = vpop.f32.mrb[0].mxu0
  %v117 = vadd.f32 %v20, %v116
  %v118 = vpop.f32.mrb[0].mxu0
  %119 = vmatprep.mubr.f32.mxu0 0.0
  %120 = vmatmul.mubr.f32.gmra.mrb[0].mxu0 %v37
  %v121 = vpop.f32.mrb[0].mxu0
  %v122 = vadd.f32 %v21, %v121
  %v123 = vpop.f32.mrb[0].mxu0
  %124 = vmatprep.mubr.f32.mxu0 0.0
  %125 = vmatmul.mubr.f32.gmra.mrb[0].mxu0 %v40
  %v126 = vpop.f32.mrb[0].mxu0
  %v127 = vadd.f32 %v22, %v126
  %v128 = vpop.f32.mrb[0].mxu0
  %129 = vmatprep.mubr.f32.mxu0 0.0
  %130 = vmatmul.mubr.f32.gmra.mrb[0].mxu0 %v43
  %v131 = vpop.f32.mrb[0].mxu0
  %v132 = vadd.f32 %v23, %v131
  %v133 = vpop.f32.mrb[0].mxu0
  %134 = vdwg.mxu0
  %vm135 = vcmask 261120
  %136 = vst.msk [vmem:[%s2] sm:$0xff] %vm135, %v112
  %137 = vst.msk [vmem:[%s2 + $0x8] sm:$0xff] %vm135, %v117
  %138 = vst.msk [vmem:[%s2 + $0x10] sm:$0xff] %vm135, %v122
  %139 = vst.msk [vmem:[%s2 + $0x18] sm:$0xff] %vm135, %v127
  %vm140 = vcmask 254976
  %141 = vst.msk [vmem:[%s2 + $0x20] sm:$0x3] %vm140, %v132
  // Predicated region
  $region10: #{skin_motion_embeddings.1} parent=0 // pred_check
    _
  $region11: #{skin_motion_embeddings.1} parent=0 // pred_check_branch
    %143 = sbr.rel (0) target = $region13
  $region12: #{skin_motion_embeddings.1} parent=0 // pred_region
    _
  $region13: #{skin_motion_embeddings.1} parent=0 // pred_fallthru
    _
  // Predicated region
  $region14: #{skin_motion_embeddings.1} parent=0 // pred_check
    _
  $region15: #{skin_motion_embeddings.1} parent=0 // pred_check_branch
    %145 = sbr.rel (0) target = $region17
  $region16: #{skin_motion_embeddings.1} parent=0 // pred_region
    _
  $region17: #{skin_motion_embeddings.1} parent=0 // pred_fallthru
    _

</llo_original>
